<compile_context>
chip_gen: v5e
topology: v5e:2x2
jax: 0.10.0
libtpu: 0.0.40
codegen_flags: <defaults>
</compile_context>

<pallas_src>
import functools

import jax
import jax.numpy as jnp
from jax.experimental import pallas as pl
from jax.experimental.pallas import tpu as pltpu


def _encoder_kernel(x_ref, w_ref, b_ref, o_ref, *, k1):
    """Fused two-head encode: one MXU matmul, f32 epilogue, lane-dense store.

    z = x @ [W1|W2] + [b1|b2]          (f32 accumulate)
    out[:, :k1] = sigmoid(z[:, :k1])   (known concepts)
    out[:, k1:] = z[:, k1:]            (unknown concepts, linear)
    """
    z = jnp.dot(x_ref[...], w_ref[...], preferred_element_type=jnp.float32)
    z = z + b_ref[...]                                   # (1, Kp) broadcast

    # sigmoid(z) == 0.5*tanh(0.5*z) + 0.5 : single EUP transcendental, no f32
    # divide (v5e-friendly); the extra lanes (>= K) are free filler.
    sig = 0.5 * jnp.tanh(0.5 * z) + 0.5
    lane = jax.lax.broadcasted_iota(jnp.int32, z.shape, dimension=1)
    o_ref[...] = jnp.where(lane < k1, sig, z).astype(o_ref.dtype)


def make_autoencoder_forward(w1, b1, w2, b2):
    """Builds AutoEncoder.forward(x) with the weight fusion hoisted to init.

    Returns a jitted callable x -> (encoded_1, encoded_2, real_fake) where
    real_fake == ones(1), matching `return encoded_1, encoded_2, torch.ones(1)`.
    """
    w1 = jnp.asarray(w1, jnp.float32)
    w2 = jnp.asarray(w2, jnp.float32)
    b1 = jnp.asarray(b1, jnp.float32).reshape(1, -1)     # accept (K,) or (1, K)
    b2 = jnp.asarray(b2, jnp.float32).reshape(1, -1)

    D, K1 = w1.shape
    K2 = w2.shape[1]
    K = K1 + K2
    LANE = 128
    Kp = pl.cdiv(K, LANE) * LANE                          # lane-dense output width

    # One-time weight-side fusion (NOT in the per-call path).
    w = jnp.pad(jnp.concatenate([w1, w2], axis=1), ((0, 0), (0, Kp - K)))   # (D, Kp)
    b = jnp.pad(jnp.concatenate([b1, b2], axis=1), ((0, 0), (0, Kp - K)))   # (1, Kp)

    kernel = functools.partial(_encoder_kernel, k1=K1)

    @jax.jit
    def forward(x):
        x = jnp.asarray(x, jnp.float32)
        B = x.shape[0]

        cost = pl.CostEstimate(
            flops=2 * B * D * Kp,
            transcendentals=B * K1,
            bytes_accessed=4 * (B * D + D * Kp + Kp + B * Kp),
        )

        out = pl.pallas_call(
            kernel,
            out_shape=jax.ShapeDtypeStruct((B, Kp), jnp.float32),
            in_specs=[
                pl.BlockSpec(memory_space=pltpu.VMEM),    # x (B, D)  full block
                pl.BlockSpec(memory_space=pltpu.VMEM),    # W (D, Kp) full block
                pl.BlockSpec(memory_space=pltpu.VMEM),    # b (1, Kp) full block
            ],
            out_specs=pl.BlockSpec(memory_space=pltpu.VMEM),
            cost_estimate=cost,
        )(x, w, b)

        # Trim the lane-dense slab once, then split the two heads from the
        # trimmed view (wrapper-side glue; fused under jit).
        trimmed = out[:, :K]
        encoded_1 = trimmed[:, :K1]
        encoded_2 = trimmed[:, K1:]

        # Discriminator stub: `torch.ones(1)` -> constant.
        real_fake = jnp.ones((1,), dtype=out.dtype)
        return encoded_1, encoded_2, real_fake

    return forward


if __name__ == "__main__":
    # Small shapes consistent with the module: flattened backbone features of
    # dim 256, 32 known concepts, 16 unknown concepts, batch 8.
    B, D, K1, K2 = 8, 256, 32, 16

    key = jax.random.PRNGKey(0)
    kx, kw1, kb1, kw2, kb2 = jax.random.split(key, 5)

    x = jax.random.normal(kx, (B, D), dtype=jnp.float32)
    w1 = jax.random.normal(kw1, (D, K1), dtype=jnp.float32) * (1.0 / D) ** 0.5
    b1 = jax.random.normal(kb1, (K1,), dtype=jnp.float32) * 0.01   # torch-style 1-D bias
    w2 = jax.random.normal(kw2, (D, K2), dtype=jnp.float32) * (1.0 / D) ** 0.5
    b2 = jax.random.normal(kb2, (K2,), dtype=jnp.float32) * 0.01

    forward = make_autoencoder_forward(w1, b1, w2, b2)
    enc1, enc2, real_fake = forward(x)
    jax.block_until_ready((enc1, enc2, real_fake))

    # Reference check in plain JAX (tolerance covers MXU f32 pass decomposition).
    ref1 = jax.nn.sigmoid(x @ w1 + b1[None, :])
    ref2 = x @ w2 + b2[None, :]
    assert enc1.shape == (B, K1) and enc2.shape == (B, K2)
    assert real_fake.shape == (1,) and float(real_fake[0]) == 1.0
    assert jnp.allclose(enc1, ref1, atol=2e-2, rtol=2e-2), "encoded_1 mismatch"
    assert jnp.allclose(enc2, ref2, atol=2e-2, rtol=2e-2), "encoded_2 mismatch"

    print("KERNEL_OK")
</pallas_src>

<mosaic_0001>
module attributes {stable_mosaic.version = 11 : i64} {
  func.func @_encoder_kernel(%arg0: memref<8x256xf32, #tpu.memory_space<vmem>>, %arg1: memref<256x128xf32, #tpu.memory_space<vmem>>, %arg2: memref<1x128xf32, #tpu.memory_space<vmem>>, %arg3: memref<8x128xf32, #tpu.memory_space<vmem>>) attributes {dimension_semantics = [], scalar_prefetch = 0 : i64, scratch_operands = 0 : i64, tpu.core_type = #tpu.core_type<tc>} {
    %c0 = arith.constant 0 : index
    %c0_0 = arith.constant 0 : index
    %0 = vector.load %arg0[%c0, %c0_0] : memref<8x256xf32, #tpu.memory_space<vmem>>, vector<8x256xf32>
    %c0_1 = arith.constant 0 : index
    %c0_2 = arith.constant 0 : index
    %1 = vector.load %arg1[%c0_1, %c0_2] : memref<256x128xf32, #tpu.memory_space<vmem>>, vector<256x128xf32>
    %cst = arith.constant dense<0.000000e+00> : vector<8x128xf32>
    %2 = tpu.matmul %0, %1, %cst {dimension_numbers = #tpu.dot_dimension_numbers<[1], [0], [0], [1], [0, 0, 1, 1], [], []>} : vector<8x256xf32>, vector<256x128xf32>, vector<8x128xf32> -> vector<8x128xf32>
    %c0_3 = arith.constant 0 : index
    %c0_4 = arith.constant 0 : index
    %3 = vector.load %arg2[%c0_3, %c0_4] : memref<1x128xf32, #tpu.memory_space<vmem>>, vector<1x128xf32>
    %4 = vector.broadcast %3 : vector<1x128xf32> to vector<8x128xf32>
    %5 = arith.addf %2, %4 : vector<8x128xf32>
    %cst_5 = arith.constant 5.000000e-01 : f32
    %6 = vector.broadcast %cst_5 : f32 to vector<8x128xf32>
    %7 = arith.mulf %6, %5 : vector<8x128xf32>
    %8 = math.tanh %7 : vector<8x128xf32>
    %cst_6 = arith.constant 5.000000e-01 : f32
    %9 = vector.broadcast %cst_6 : f32 to vector<8x128xf32>
    %10 = arith.mulf %9, %8 : vector<8x128xf32>
    %cst_7 = arith.constant 5.000000e-01 : f32
    %11 = vector.broadcast %cst_7 : f32 to vector<8x128xf32>
    %12 = arith.addf %10, %11 : vector<8x128xf32>
    %13 = tpu.iota {dimensions = array<i32: 1>} : vector<8x128xi32>
    %c32_i32 = arith.constant 32 : i32
    %14 = vector.broadcast %c32_i32 : i32 to vector<8x128xi32>
    %15 = arith.cmpi slt, %13, %14 : vector<8x128xi32>
    %16 = arith.select %15, %12, %5 : vector<8x128xi1>, vector<8x128xf32>
    %c0_8 = arith.constant 0 : index
    %c0_9 = arith.constant 0 : index
    %17 = vector.load %arg3[%c0_8, %c0_9] : memref<8x128xf32, #tpu.memory_space<vmem>>, vector<8x128xf32>
    tpu.vector_store %arg3[%c0_8, %c0_9], %16 {strides = array<i32>} : memref<8x128xf32, #tpu.memory_space<vmem>>, vector<8x128xf32>,
    return
  }
}

</mosaic_0001>

<llo_original>
// kernel: forward.1
$region0: #{forward.1}
  #allocation0 [shape = 'u32[]', space=smem, size = 0x4, offset = 0x4, fixed_abs, tag = 'smem constant byte address 0x4 - core index']
  #allocation1 [shape = 'u32[72,128]{1,0:T(1,128)}', space=vmem, size = 0x9000, scoped, tag = 'internal scratch']
  %s0 = inlined_call_operand.hbm [shape: f32[8,256], index: 0, kind: input, shape index: {}]
  %s1 = inlined_call_operand.hbm [shape: f32[256,128], index: 1, kind: input, shape index: {}]
  %s2 = inlined_call_operand.vmem [shape: f32[1,128], index: 2, kind: input, shape index: {}]
  %s3 = inlined_call_operand.vmem [shape: f32[8,128], index: 3, kind: output, shape index: {}]
  %s4 = sld [smem:[#allocation0]]
  $region30: #{forward.1} parent=0
    _
  %s6 = ssub.s32 1, %s4
  %s7 = scalar_select 0, %s6, %s4
  $region1: #{forward.1} parent=0
    #allocation2 [shape = 'u8[8192]{0}', space=vmem, size = 0x2000, scoped, tag = 'input window, operand 0, single buffered']
    #allocation3 [shape = 's32[1]{0}', space=sflag, size = 0x4, scoped, tag = 'scoped memory for forward.1']
    #allocation4 [shape = 'u8[131072]{0}', space=vmem, size = 0x20000, scoped, tag = 'input window, operand 1, single buffered']
    #allocation5 [shape = 's32[1]{0}', space=sflag, size = 0x4, scoped, tag = 'scoped memory for forward.1']
    %8 = vsyncpa [#allocation3], 0
    %9 = vsyncpa [#allocation5], 0
    // Predicated region
    $region2: #{forward.1} parent=1 // pred_check
      _
    $region3: #{forward.1} parent=1 // pred_check_branch
      %11 = sbr.rel (0) target = $region5
    $region4: #{forward.1} parent=1 // pred_region
      %13 = vsyncadd [#allocation3], 0
      %s15 = sshll.u32 %s0, 4
      %s16 = int_to_ptr.hbm [resolvable:$true] %s15
      %s17 = sshll.u32 [#allocation2], 4
      %s18 = int_to_ptr.vmem [resolvable:$true] %s17
      %20 = dma.hbm_to_vmem [thread:$0]  %s16, 256, %s18, [#allocation3]
    $region5: #{forward.1} parent=1 // pred_fallthru
      _
    // Predicated region
    $region6: #{forward.1} parent=1 // pred_check
      _
    $region7: #{forward.1} parent=1 // pred_check_branch
      %22 = sbr.rel (0) target = $region9
    $region8: #{forward.1} parent=1 // pred_region
      %24 = vsyncadd [#allocation5], 0
      %s25 = sshll.u32 %s1, 4
      %s26 = int_to_ptr.hbm [resolvable:$true] %s25
      %s27 = sshll.u32 [#allocation4], 4
      %s28 = int_to_ptr.vmem [resolvable:$true] %s27
      %33 = dma.hbm_to_vmem [thread:$0]  %s26, 4096, %s28, [#allocation5], 128, 128, 8
    $region9: #{forward.1} parent=1 // pred_fallthru
      _
    // Predicated region
    $region10: #{forward.1} parent=1 // pred_check
      _
    $region11: #{forward.1} parent=1 // pred_check_branch
      %35 = sbr.rel (0) target = $region13
    $region12: #{forward.1} parent=1 // pred_region
      _
    $region13: #{forward.1} parent=1 // pred_fallthru
      _
    // Predicated region
    $region14: #{forward.1} parent=1 // pred_check
      _
    $region15: #{forward.1} parent=1 // pred_check_branch
      %37 = sbr.rel (0) target = $region17
    $region16: #{forward.1} parent=1 // pred_region
      %39 = dma.done [#allocation3], 256
    $region17: #{forward.1} parent=1 // pred_fallthru
      _
    // Predicated region
    $region18: #{forward.1} parent=1 // pred_check
      _
    $region19: #{forward.1} parent=1 // pred_check_branch
      %41 = sbr.rel (0) target = $region21
    $region20: #{forward.1} parent=1 // pred_region
      %43 = dma.done [#allocation5], 4096
    $region21: #{forward.1} parent=1 // pred_fallthru
      _
    %v44 = vld [vmem:[#allocation2] sm:$0xff]
    %v45 = vld [vmem:[#allocation2 + $0x8] sm:$0xff]
    %v46 = vld [vmem:[#allocation4] sm:$0xff]
    %v47 = vld [vmem:[#allocation4 + $0x8] sm:$0xff]
    %v48 = vld [vmem:[#allocation4 + $0x10] sm:$0xff]
    %v49 = vld [vmem:[#allocation4 + $0x18] sm:$0xff]
    %v50 = vld [vmem:[#allocation4 + $0x20] sm:$0xff]
    %v51 = vld [vmem:[#allocation4 + $0x28] sm:$0xff]
    %v52 = vld [vmem:[#allocation4 + $0x30] sm:$0xff]
    %v53 = vld [vmem:[#allocation4 + $0x38] sm:$0xff]
    %v54 = vld [vmem:[#allocation4 + $0x40] sm:$0xff]
    %v55 = vld [vmem:[#allocation4 + $0x48] sm:$0xff]
    %v56 = vld [vmem:[#allocation4 + $0x50] sm:$0xff]
    %v57 = vld [vmem:[#allocation4 + $0x58] sm:$0xff]
    %v58 = vld [vmem:[#allocation4 + $0x60] sm:$0xff]
    %v59 = vld [vmem:[#allocation4 + $0x68] sm:$0xff]
    %v60 = vld [vmem:[#allocation4 + $0x70] sm:$0xff]
    %v61 = vld [vmem:[#allocation4 + $0x78] sm:$0xff]
    %v62 = vld [vmem:[#allocation4 + $0x80] sm:$0xff]
    %v63 = vld [vmem:[#allocation4 + $0x88] sm:$0xff]
    %v64 = vld [vmem:[#allocation4 + $0x90] sm:$0xff]
    %v65 = vld [vmem:[#allocation4 + $0x98] sm:$0xff]
    %v66 = vld [vmem:[#allocation4 + $0xa0] sm:$0xff]
    %v67 = vld [vmem:[#allocation4 + $0xa8] sm:$0xff]
    %v68 = vld [vmem:[#allocation4 + $0xb0] sm:$0xff]
    %v69 = vld [vmem:[#allocation4 + $0xb8] sm:$0xff]
    %v70 = vld [vmem:[#allocation4 + $0xc0] sm:$0xff]
    %v71 = vld [vmem:[#allocation4 + $0xc8] sm:$0xff]
    %v72 = vld [vmem:[#allocation4 + $0xd0] sm:$0xff]
    %v73 = vld [vmem:[#allocation4 + $0xd8] sm:$0xff]
    %v74 = vld [vmem:[#allocation4 + $0xe0] sm:$0xff]
    %v75 = vld [vmem:[#allocation4 + $0xe8] sm:$0xff]
    %v76 = vld [vmem:[#allocation4 + $0xf0] sm:$0xff]
    %v77 = vld [vmem:[#allocation4 + $0xf8] sm:$0xff]
    %v78 = vld [vmem:[%s2] sm:$0x1]
    %v80 = vperm.slane %v78, 0
    %82 = vmatpush.msra.mxu0 %v61
    %83 = vmatpush.msra.mxu0 %v60
    %84 = vmatpush.msra.mxu0 %v59
    %85 = vmatpush.msra.mxu0 %v58
    %86 = vmatpush.msra.mxu0 %v57
    %87 = vmatpush.msra.mxu0 %v56
    %88 = vmatpush.msra.mxu0 %v55
    %89 = vmatpush.msra.mxu0 %v54
    %90 = vmatpush.msra.mxu0 %v53
    %91 = vmatpush.msra.mxu0 %v52
    %92 = vmatpush.msra.mxu0 %v51
    %93 = vmatpush.msra.mxu0 %v50
    %94 = vmatpush.msra.mxu0 %v49
    %95 = vmatpush.msra.mxu0 %v48
    %96 = vmatpush.msra.mxu0 %v47
    %97 = vmatpush.msra.mxu0 %v46
    %98 = vmatmul.f32.gmra.mxu0 %v44
    %v99 = vpop.f32.mrf.mxu0
    %v100 = vadd.f32 %v80, %v99
    %101 = vdwg.mxu0
    %102 = vmatpush.msra.mxu0 %v77
    %103 = vmatpush.msra.mxu0 %v76
    %104 = vmatpush.msra.mxu0 %v75
    %105 = vmatpush.msra.mxu0 %v74
    %106 = vmatpush.msra.mxu0 %v73
    %107 = vmatpush.msra.mxu0 %v72
    %108 = vmatpush.msra.mxu0 %v71
    %109 = vmatpush.msra.mxu0 %v70
    %110 = vmatpush.msra.mxu0 %v69
    %111 = vmatpush.msra.mxu0 %v68
    %112 = vmatpush.msra.mxu0 %v67
    %113 = vmatpush.msra.mxu0 %v66
    %114 = vmatpush.msra.mxu0 %v65
    %115 = vmatpush.msra.mxu0 %v64
    %116 = vmatpush.msra.mxu0 %v63
    %117 = vmatpush.msra.mxu0 %v62
    %118 = vmatmul.f32.gmra.mxu0 %v45
    %v119 = vpop.f32.mrf.mxu0
    %v120 = vadd.f32 %v100, %v119
    %121 = vdwg.mxu0
    %v122 = vmul.f32 %v120, 0.5
    %v123 = vtanh.pop %v122
    %v124 = vmul.f32 %v123, 0.5
    %v125 = vadd.f32 %v124, 0.5
    %v126 = vlaneseq
    %v127 = vand.u32 %v126, 127
    %vm128 = vcmp.lt.s32.totalorder %v127, 32
    %v129 = vsel %vm128, %v125, %v120
    %130 = vst [vmem:[%s3] sm:$0xff] %v129
    // Predicated region
    $region22: #{forward.1} parent=1 // pred_check
      _
    $region23: #{forward.1} parent=1 // pred_check_branch
      %132 = sbr.rel (0) target = $region25
    $region24: #{forward.1} parent=1 // pred_region
      _
    $region25: #{forward.1} parent=1 // pred_fallthru
      _
    // Predicated region
    $region26: #{forward.1} parent=1 // pred_check
      _
    $region27: #{forward.1} parent=1 // pred_check_branch
      %134 = sbr.rel (0) target = $region29
    $region28: #{forward.1} parent=1 // pred_region
      _
    $region29: #{forward.1} parent=1 // pred_fallthru
      _
    %135 = vsyncpa [#allocation3], 1
    %136 = vsyncpa [#allocation5], 1

</llo_original>
